<compile_context>
chip_gen: v6e
topology: v6e:2x2x1
jax: 0.10.0
libtpu: 0.0.40
codegen_flags: <defaults>
</compile_context>

<pallas_src>
import jax
import jax.numpy as jnp
from jax.experimental import pallas as pl
from jax.experimental.pallas import tpu as pltpu

LANES = 1024        # last-dim width: multiple of 128, lane-dense for f32
TILE_ROWS = 1024    # (1024, 1024) f32 = 4 MiB per pipeline buffer (16 MiB dbl-buffered in+out)


def _logreg_kernel(w_ref, b_ref, x_ref, o_ref):
    # w_ref / b_ref: scalar-prefetch SMEM refs of shape (1,).
    # x_ref / o_ref: (tm, LANES) VMEM tiles.
    w = w_ref[0]
    b = b_ref[0]
    z = x_ref[...] * w + b          # Linear(1, 1): x @ W.T + b  (VPU mul-add)
    o_ref[...] = jax.nn.sigmoid(z)  # F.sigmoid (exp/recip on EUP, hidden under HBM time)


def logistic_regression(x, weight, bias, *, lanes=LANES, tile_rows=TILE_ROWS):
    """x: (N, 1) f32; weight: (1, 1) f32; bias: (1,) f32  ->  (N, 1) f32."""
    n, f = x.shape
    assert f == 1 and weight.shape == (1, 1) and bias.shape == (1,)
    w_scalar = weight.reshape((1,))
    b_scalar = bias.reshape((1,))

    # Lane-dense repack: (N, 1) -> (rows, lanes). Reshape is free; padding (only for
    # N not a multiple of `lanes`) adds < `lanes` elements.
    flat = x.reshape((n,))
    rows = -(-n // lanes)                      # ceil(n / lanes)
    padded = rows * lanes
    if padded != n:
        flat = jnp.pad(flat, (0, padded - n))  # pad values harmless; sliced off below
    slab = flat.reshape((rows, lanes))

    # Block choice: full-array block for small inputs (single grid step, any row count is
    # legal since it equals the array dim); otherwise (tile_rows, lanes) blocks with a
    # cdiv grid — Pallas masks the ragged last block, so no dead-tile traffic.
    tm = rows if rows <= tile_rows else tile_rows
    grid = (pl.cdiv(rows, tm),)

    out = pl.pallas_call(
        _logreg_kernel,
        out_shape=jax.ShapeDtypeStruct((rows, lanes), x.dtype),
        grid_spec=pltpu.PrefetchScalarGridSpec(
            num_scalar_prefetch=2,             # weight, bias -> SMEM, passed first to kernel
            grid=grid,
            in_specs=[pl.BlockSpec((tm, lanes), lambda i, w, b: (i, 0))],
            out_specs=pl.BlockSpec((tm, lanes), lambda i, w, b: (i, 0)),
        ),
        compiler_params=pltpu.CompilerParams(
            dimension_semantics=("parallel",),  # lets v7x's 2 TCs split the row loop
            vmem_limit_bytes=32 << 20,          # 16 MiB live tiles + headroom; safe on v5e/v6e/v7x
        ),
    )(w_scalar, b_scalar, slab)

    # Reshape back to (N, 1); the slice only exists for ragged N.
    out_flat = out.reshape((padded,))
    if padded != n:
        out_flat = out_flat[:n]
    return out_flat.reshape((n, 1))


if __name__ == "__main__":
    key = jax.random.PRNGKey(0)
    kx, kw, kb, kx2, kx3 = jax.random.split(key, 5)

    # Deterministic parameter init (shapes from nn.Linear(1, 1)).
    weight = jax.random.uniform(kw, (1, 1), jnp.float32, minval=-1.0, maxval=1.0)
    bias = jax.random.uniform(kb, (1,), jnp.float32, minval=-1.0, maxval=1.0)

    # Small input consistent with the forward: (batch, 1).
    x = jax.random.normal(kx, (8, 1), jnp.float32)
    y = logistic_regression(x, weight, bias)
    jax.block_until_ready(y)
    y_ref = jax.nn.sigmoid(x @ weight.T + bias)
    assert y.shape == (8, 1)
    assert jnp.allclose(y, y_ref, atol=1e-6), "mismatch vs reference (N=8)"

    # Non-multiple-of-1024 batch exercises the (minimal) pad/slice path.
    x2 = jax.random.normal(kx2, (2000, 1), jnp.float32)
    y2 = logistic_regression(x2, weight, bias)
    jax.block_until_ready(y2)
    y2_ref = jax.nn.sigmoid(x2 @ weight.T + bias)
    assert y2.shape == (2000, 1)
    assert jnp.allclose(y2, y2_ref, atol=1e-6), "mismatch vs reference (N=2000)"

    # Lane-aligned batch exercises the copy-free (no pad, no slice) path.
    x3 = jax.random.normal(kx3, (4096, 1), jnp.float32)
    y3 = logistic_regression(x3, weight, bias)
    jax.block_until_ready(y3)
    y3_ref = jax.nn.sigmoid(x3 @ weight.T + bias)
    assert y3.shape == (4096, 1)
    assert jnp.allclose(y3, y3_ref, atol=1e-6), "mismatch vs reference (N=4096)"

    print("KERNEL_OK")
</pallas_src>

<mosaic_0001>
module attributes {stable_mosaic.version = 11 : i64} {
  func.func @_logreg_kernel(%arg0: i32, %arg1: memref<1xf32, #tpu.memory_space<smem>>, %arg2: memref<1xf32, #tpu.memory_space<smem>>, %arg3: memref<1x1024xf32, #tpu.memory_space<vmem>>, %arg4: memref<1x1024xf32, #tpu.memory_space<vmem>>) attributes {dimension_semantics = [#tpu.dimension_semantics<parallel>], iteration_bounds = array<i64: 1>, scalar_prefetch = 2 : i64, scratch_operands = 0 : i64, tpu.core_type = #tpu.core_type<tc>, window_params = [{transform_indices = @transform_0, window_bounds = array<i64: 1, 1024>}, {transform_indices = @transform_1, window_bounds = array<i64: 1, 1024>}]} {
    %c0 = arith.constant 0 : index
    %0 = memref.load %arg1[%c0] : memref<1xf32, #tpu.memory_space<smem>>
    %c0_0 = arith.constant 0 : index
    %1 = memref.load %arg2[%c0_0] : memref<1xf32, #tpu.memory_space<smem>>
    %c0_1 = arith.constant 0 : index
    %c0_2 = arith.constant 0 : index
    %2 = vector.load %arg3[%c0_1, %c0_2] : memref<1x1024xf32, #tpu.memory_space<vmem>>, vector<1x1024xf32>
    %3 = vector.broadcast %0 : f32 to vector<1x1024xf32>
    %4 = arith.mulf %2, %3 : vector<1x1024xf32>
    %5 = vector.broadcast %1 : f32 to vector<1x1024xf32>
    %6 = arith.addf %4, %5 : vector<1x1024xf32>
    %7 = arith.negf %6 : vector<1x1024xf32>
    %8 = math.exp %7 : vector<1x1024xf32>
    %cst = arith.constant 1.000000e+00 : f32
    %9 = vector.broadcast %cst : f32 to vector<1x1024xf32>
    %10 = arith.addf %9, %8 : vector<1x1024xf32>
    %11 = arith.divf %9, %10 : vector<1x1024xf32>
    %c0_3 = arith.constant 0 : index
    %c0_4 = arith.constant 0 : index
    %12 = vector.load %arg4[%c0_3, %c0_4] : memref<1x1024xf32, #tpu.memory_space<vmem>>, vector<1x1024xf32>
    tpu.vector_store %arg4[%c0_3, %c0_4], %11 {strides = array<i32>} : memref<1x1024xf32, #tpu.memory_space<vmem>>, vector<1x1024xf32>,
    return
  }
  func.func @transform_0(%arg0: i32, %arg1: memref<1xf32, #tpu.memory_space<smem>>, %arg2: memref<1xf32, #tpu.memory_space<smem>>) -> (i32, i32) {
    %c0_i32 = arith.constant 0 : i32
    %c0_i32_0 = arith.constant 0 : i32
    return %arg0, %c0_i32 : i32, i32
  }
  func.func @transform_1(%arg0: i32, %arg1: memref<1xf32, #tpu.memory_space<smem>>, %arg2: memref<1xf32, #tpu.memory_space<smem>>) -> (i32, i32) {
    %c0_i32 = arith.constant 0 : i32
    %c0_i32_0 = arith.constant 0 : i32
    return %arg0, %c0_i32 : i32, i32
  }
}

</mosaic_0001>

<llo_original>
// kernel: tpu_custom_call.1
$region0: #{tpu_custom_call.1}
  #allocation0 [shape = 'u32[]', space=smem, size = 0x4, offset = 0x4, fixed_abs, tag = 'smem constant byte address 0x4 - core index']
  #allocation1 [shape = 'u32[144,128]{1,0:T(1,128)}', space=vmem, size = 0x12000, scoped, tag = 'internal scratch']
  #allocation2 [shape = 's32[1]{0}', space=sflag, size = 0x4, scoped, tag = 'scoped memory for tpu_custom_call.1']
  #allocation3 [shape = 'f32[1]{0:T(128)S(6)}', space=smem, size = 0x200, scoped, tag = 'prefetched SMEM operand 0']
  #allocation4 [shape = 'f32[1]{0:T(128)S(6)}', space=smem, size = 0x200, scoped, tag = 'prefetched SMEM operand 1']
  %s0 = inlined_call_operand.<no memory space> [shape: f32[1], index: 0, kind: input, shape index: {}]
  %s1 = inlined_call_operand.<no memory space> [shape: f32[1], index: 1, kind: input, shape index: {}]
  %s2 = inlined_call_operand.hbm [shape: f32[1,1024], index: 2, kind: input, shape index: {}]
  %s3 = inlined_call_operand.hbm [shape: f32[1,1024], index: 3, kind: output, shape index: {}]
  %s4 = sld [smem:[#allocation0]]
  $region18: #{tpu_custom_call.1} parent=0
    _
  %s6 = ssub.s32 1, %s4
  %s7 = scalar_select 0, %s6, %s4
  %8 = sst [smem:[#allocation3]] %s0
  %9 = sst [smem:[#allocation4]] %s1
  $region1: #{tpu_custom_call.1} parent=0
    #allocation5 [shape = 'u8[4096]{0}', space=vmem, size = 0x1000, scoped, tag = 'input window, operand 2, single buffered']
    #allocation6 [shape = 's32[1]{0}', space=sflag, size = 0x4, scoped, tag = 'scoped memory for tpu_custom_call.1']
    #allocation7 [shape = 's32[1]{0}', space=sflag, size = 0x4, scoped, tag = 'scoped memory for tpu_custom_call.1']
    #allocation8 [shape = 'u8[4096]{0}', space=vmem, size = 0x1000, scoped, tag = 'output window, operand 0, single buffered']
    %10 = vsyncpa [#allocation6], 0
    %11 = vsyncpa [#allocation7], 0
    // Predicated region
    $region2: #{tpu_custom_call.1} parent=1 // pred_check
      _
    $region3: #{tpu_custom_call.1} parent=1 // pred_check_branch
      %13 = sbr.rel (0) target = $region5
    $region4: #{tpu_custom_call.1} parent=1 // pred_region
      %s15 = ssub.s32 128, 128
      %16 = vsyncadd [#allocation6], %s15
      %s18 = sshll.u32 [#allocation5], 4
      %s19 = int_to_ptr.vmem [resolvable:$true] %s18
      %21 = dma.hbm_to_vmem [thread:$0]  %s2, 128, %s19, [#allocation6]
    $region5: #{tpu_custom_call.1} parent=1 // pred_fallthru
      _
    // Predicated region
    $region6: #{tpu_custom_call.1} parent=1 // pred_check
      _
    $region7: #{tpu_custom_call.1} parent=1 // pred_check_branch
      %23 = sbr.rel (0) target = $region9
    $region8: #{tpu_custom_call.1} parent=1 // pred_region
      %24 = dma.done [#allocation6], 128
    $region9: #{tpu_custom_call.1} parent=1 // pred_fallthru
      _
    %s25 = sld [smem:[#allocation3]]
    %s26 = sld [smem:[#allocation4]]
    %v27 = vld [vmem:[#allocation5] sm:$0xff]
    %v28 = vstv %s25
    %v29 = vmul.f32 %v27, %v28
    %v30 = vstv %s26
    %v31 = vadd.f32 %v29, %v30
    %v32 = vxor.u32 %v31, 2147483648
    %v33 = vmul.f32 %v32, 1.442695
    %v34 = vpow.pop %v33
    %v35 = vadd.f32 %v34, 1.0
    %v36 = vrcp.pop %v35
    %v37 = vmul.f32 1.0, %v36
    %38 = vst [vmem:[#allocation8] sm:$0xff] %v37
    // Predicated region
    $region10: #{tpu_custom_call.1} parent=1 // pred_check
      _
    $region11: #{tpu_custom_call.1} parent=1 // pred_check_branch
      %40 = sbr.rel (0) target = $region13
    $region12: #{tpu_custom_call.1} parent=1 // pred_region
      %s42 = ssub.s32 128, 128
      %43 = vsyncadd [#allocation7], %s42
      %s45 = sshll.u32 [#allocation8], 4
      %s46 = int_to_ptr.vmem [resolvable:$true] %s45
      %48 = dma.vmem_to_hbm [thread:$0]  %s46, 128, %s3, [#allocation7]
    $region13: #{tpu_custom_call.1} parent=1 // pred_fallthru
      _
    // Predicated region
    $region14: #{tpu_custom_call.1} parent=1 // pred_check
      _
    $region15: #{tpu_custom_call.1} parent=1 // pred_check_branch
      %50 = sbr.rel (0) target = $region17
    $region16: #{tpu_custom_call.1} parent=1 // pred_region
      %51 = dma.done [#allocation7], 128
    $region17: #{tpu_custom_call.1} parent=1 // pred_fallthru
      _
    %52 = vsyncpa [#allocation6], 1
    %53 = vsyncpa [#allocation7], 1

</llo_original>
